<compile_context>
chip_gen: v6e
topology: v6e:2x2x1
jax: 0.10.0
libtpu: 0.0.40
codegen_flags: <defaults>
</compile_context>

<pallas_src>
import jax
import jax.numpy as jnp
import numpy as np
from jax.experimental import pallas as pl
from jax.experimental.pallas import tpu as pltpu


LANE = 128


def _round_up(x, m):
    return (x + m - 1) // m * m


def _pick_tn(dp, cap=4096):
    """Largest lane-aligned output-column tile dividing dp (capped)."""
    if dp <= cap:
        return dp
    for tn in (4096, 2048, 1024, 512, 256, 128):
        if dp % tn == 0:
            return tn
    return dp  # unreachable: dp is always a multiple of 128


def _vmem_limit_bytes():
    # Raise the scoped-VMEM cap toward physical so weights can stay resident
    # (v6e/v5e have 128 MiB physical; v7x only 64 MiB -> stay below it).
    try:
        cap = int(pltpu.get_tpu_info().vmem_capacity_bytes)
    except Exception:
        cap = 64 * 1024 * 1024
    return min(int(cap * 0.85), 100 * 1024 * 1024)


# ----------------------------------------------------------------------------
# Fused multi-condition MLP + classifier-free-guidance combine kernel
# ----------------------------------------------------------------------------
def _fused_cfg_mlp_kernel(coef_ref,                      # SMEM [C]     f32
                          feat_ref,                      # [TB, DBp]    bf16
                          emb_ref,                       # [C, TB, Ep]  bf16
                          w1b_ref,                       # [DBp, Hp]    bf16
                          w1e_ref,                       # [Ep,  Hp]    bf16
                          b1_ref,                        # [1,   Hp]    f32
                          w2_ref,                        # [Hp,  TN]    bf16
                          b2_ref,                        # [1,   TN]    f32
                          o_ref,                         # [TB,  TN]    f32
                          h_sc):                         # scratch [TB, Hp] bf16
    # --- CFG-combined hidden state: once per batch tile (first column tile) --
    @pl.when(pl.program_id(1) == 0)
    def _():
        h_base = jnp.dot(feat_ref[...], w1b_ref[...],
                         preferred_element_type=jnp.float32) + b1_ref[...]
        w1e = w1e_ref[...]
        n_cond = emb_ref.shape[0]                        # static, small
        h_comb = jnp.zeros(h_base.shape, jnp.float32)
        for c in range(n_cond):                          # static unroll
            h_c = h_base + jnp.dot(emb_ref[c], w1e,
                                   preferred_element_type=jnp.float32)
            h_comb = h_comb + coef_ref[c] * jnp.maximum(h_c, 0.0)
        h_sc[...] = h_comb.astype(jnp.bfloat16)

    # --- single second-layer matmul on the combined hidden state -------------
    # sum(coef) == 1, so the output bias contributes exactly once.
    o_ref[...] = (jnp.dot(h_sc[...], w2_ref[...],
                          preferred_element_type=jnp.float32)
                  + b2_ref[...]).astype(o_ref.dtype)


def _fused_cfg_call(coef, feat_p, emb_p, model, tb):
    bp, dbp = feat_p.shape
    n_cond = emb_p.shape[0]
    ep, hp, dp = model.ep, model.hp, model.dp
    tn = _pick_tn(dp)
    n_bt, n_nt = bp // tb, dp // tn

    # Constant-index operands: single-buffer (halves weight VMEM footprint).
    resident = dict(pipeline_mode=pl.Buffered(1))
    # W2/b2 advance with the column axis -> keep default double-buffering,
    # unless there is a single column tile (then they are constant too).
    w2_mode = resident if n_nt == 1 else {}

    grid_spec = pltpu.PrefetchScalarGridSpec(
        num_scalar_prefetch=1,                           # guidance coefs -> SMEM
        grid=(n_bt, n_nt),
        in_specs=[
            pl.BlockSpec((tb, dbp), lambda i, j, cref: (i, 0)),
            pl.BlockSpec((n_cond, tb, ep), lambda i, j, cref: (0, i, 0)),
            pl.BlockSpec((dbp, hp), lambda i, j, cref: (0, 0), **resident),
            pl.BlockSpec((ep, hp), lambda i, j, cref: (0, 0), **resident),
            pl.BlockSpec((1, hp), lambda i, j, cref: (0, 0), **resident),
            pl.BlockSpec((hp, tn), lambda i, j, cref: (0, j), **w2_mode),
            pl.BlockSpec((1, tn), lambda i, j, cref: (0, j), **w2_mode),
        ],
        out_specs=pl.BlockSpec((tb, tn), lambda i, j, cref: (i, j)),
        scratch_shapes=[pltpu.VMEM((tb, hp), jnp.bfloat16)],
    )
    # TODO(synk): emit bf16 output if the ODE integrator tolerates it (halves
    # store bandwidth and the lane-dense out tile on v7x).
    return pl.pallas_call(
        _fused_cfg_mlp_kernel,
        out_shape=jax.ShapeDtypeStruct((bp, dp), jnp.float32),
        grid_spec=grid_spec,
        compiler_params=pltpu.CompilerParams(
            # batch tiles independent (megacore); column axis carries h_sc dep
            dimension_semantics=("parallel", "arbitrary"),
            vmem_limit_bytes=_vmem_limit_bytes(),
        ),
    )(coef, feat_p, emb_p,
      model.w1b_bf16, model.w1e_bf16, model.b1_pad, model.w2_bf16, model.b2_pad)


# ----------------------------------------------------------------------------
# Synthetic velocity model (deterministic stand-in for the cfgen FM net).
# Parameters stored pre-split (base / embedding rows of W1), zero-padded to
# (8,128)-aligned shapes and pre-cast to bf16 for the kernel; f32 copies kept
# for the pure-JAX reference.
# ----------------------------------------------------------------------------
class VelocityModel:
    def __init__(self, key, gene_dim, hidden, emb_dim, cov_num_classes,
                 guided_conditioning=True):
        self.gene_dim = gene_dim
        self.hidden = hidden
        self.emb_dim = emb_dim
        self.guided_conditioning = guided_conditioning

        d_base = gene_dim + 1 + 1                        # x | t | l
        d_in = d_base + emb_dim
        self.d_base = d_base

        k1, k2, k3 = jax.random.split(key, 3)
        w1 = jax.random.normal(k1, (d_in, hidden), jnp.float32) / np.sqrt(d_in)
        b1 = jnp.zeros((hidden,), jnp.float32)
        w2 = jax.random.normal(k2, (hidden, gene_dim), jnp.float32) / np.sqrt(hidden)
        b2 = jnp.zeros((gene_dim,), jnp.float32)
        self.w1_f32, self.b1_f32, self.w2_f32, self.b2_f32 = w1, b1, w2, b2

        # lane/sublane padded, bf16-cast kernel parameters
        self.dbp = _round_up(d_base, LANE)
        self.ep = _round_up(emb_dim, LANE)
        self.hp = _round_up(hidden, LANE)
        self.dp = _round_up(gene_dim, LANE)

        w1b = jnp.zeros((self.dbp, self.hp), jnp.float32).at[:d_base, :hidden].set(w1[:d_base])
        w1e = jnp.zeros((self.ep, self.hp), jnp.float32).at[:emb_dim, :hidden].set(w1[d_base:])
        w2p = jnp.zeros((self.hp, self.dp), jnp.float32).at[:hidden, :gene_dim].set(w2)
        self.w1b_bf16 = w1b.astype(jnp.bfloat16)
        self.w1e_bf16 = w1e.astype(jnp.bfloat16)
        self.w2_bf16 = w2p.astype(jnp.bfloat16)
        self.b1_pad = jnp.zeros((1, self.hp), jnp.float32).at[0, :hidden].set(b1)
        self.b2_pad = jnp.zeros((1, self.dp), jnp.float32).at[0, :gene_dim].set(b2)

        self.embeddings = {}
        for i, (cov, n_cls) in enumerate(cov_num_classes.items()):
            ek = jax.random.fold_in(k3, i)
            self.embeddings[cov] = jax.random.normal(ek, (n_cls, emb_dim), jnp.float32) * 0.5

    # -------- pure-JAX reference (same bf16-operand / f32-accum numerics) ----
    def _mlp_ref(self, feat):
        h = jnp.dot(feat.astype(jnp.bfloat16), self.w1_f32.astype(jnp.bfloat16),
                    preferred_element_type=jnp.float32) + self.b1_f32
        h = jnp.maximum(h, 0.0).astype(jnp.bfloat16)
        return jnp.dot(h, self.w2_f32.astype(jnp.bfloat16),
                       preferred_element_type=jnp.float32) + self.b2_f32

    def ref_model(self, x, t, l, y, unconditional=False, covariate=None):
        B = x.shape[0]
        if unconditional:
            emb = jnp.zeros((B, self.emb_dim), jnp.float32)
        elif covariate is not None:
            emb = jnp.take(self.embeddings[covariate], y[covariate], axis=0)
        else:
            emb = jnp.zeros((B, self.emb_dim), jnp.float32)
            for cov, tab in self.embeddings.items():
                emb = emb + jnp.take(tab, y[cov], axis=0)
        feat = jnp.concatenate(
            [x.astype(jnp.float32), t.astype(jnp.float32), l.astype(jnp.float32), emb],
            axis=-1)
        return self._mlp_ref(feat)


# ----------------------------------------------------------------------------
# torch_wrapper equivalent
# ----------------------------------------------------------------------------
class PallasODEWrapper:
    """JAX/Pallas equivalent of cfgen torch_wrapper (fused CFG forward)."""

    def __init__(self, model, l, y, guidance_weights, conditioning_covariates,
                 unconditional=False):
        self.model = model
        self.l = jnp.asarray(l, jnp.float32)
        self.y = y
        self.guidance_weights = guidance_weights
        self.conditioning_covariates = conditioning_covariates
        self.unconditional = unconditional
        self.guided_conditioning = model.guided_conditioning

        B = self.l.shape[0]
        self.B = B
        # sublane-aligned batch tile, large enough to amortize the weight stream
        self.tb = min(512, _round_up(B, 8))
        self.bp = _round_up(B, self.tb)

        # ---- per-condition embeddings + CFG coefficients: built ONCE --------
        # (l and y are fixed for the whole ODE solve.)
        def pad_emb(e):
            return jnp.zeros((self.bp, model.ep), jnp.float32).at[
                :B, :model.emb_dim].set(e)

        embs, coefs = [], []
        if self.unconditional:
            embs.append(jnp.zeros((self.bp, model.ep), jnp.float32))
            coefs.append(1.0)
        elif self.guided_conditioning:
            # m = m_uncond + sum_c w_c (m_c - m_uncond)
            #   = (1 - sum w) m_uncond + sum_c w_c m_c    (sum(coef) == 1)
            w = [float(guidance_weights[cov]) for cov in conditioning_covariates]
            if 1.0 - sum(w) != 0.0:                      # skip zero-coef pass
                embs.append(jnp.zeros((self.bp, model.ep), jnp.float32))
                coefs.append(1.0 - sum(w))
            for cov, wc in zip(conditioning_covariates, w):
                if wc != 0.0:                            # skip zero-coef pass
                    embs.append(pad_emb(jnp.take(model.embeddings[cov],
                                                 y[cov], axis=0)))
                    coefs.append(wc)
            if not embs:                                  # defensive; cannot occur
                embs.append(jnp.zeros((self.bp, model.ep), jnp.float32))
                coefs.append(1.0)
        else:
            e = jnp.zeros((B, model.emb_dim), jnp.float32)
            for cov, tab in model.embeddings.items():
                e = e + jnp.take(tab, y[cov], axis=0)
            embs.append(pad_emb(e))
            coefs.append(1.0)

        self.emb_p = jnp.stack(embs, axis=0).astype(jnp.bfloat16)   # [C, Bp, Ep]
        self.coef = jnp.asarray(coefs, jnp.float32)                 # SMEM scalars

        # fuse the per-ODE-step host work (feat build + kernel + slice)
        self._fwd = jax.jit(self._forward)

    def _forward(self, t, x):
        model = self.model
        B = self.B
        # torch: t.repeat(x.shape[0])[:, None]   (scalar ODE time)
        t_b = jnp.broadcast_to(
            jnp.reshape(t, (-1,))[:1].astype(jnp.float32), (B,))[:, None]
        feat = jnp.concatenate([x.astype(jnp.float32), t_b, self.l],
                               axis=-1).astype(jnp.bfloat16)
        feat_p = jnp.zeros((self.bp, model.dbp), jnp.bfloat16).at[
            :B, :model.d_base].set(feat)
        out_p = _fused_cfg_call(self.coef, feat_p, self.emb_p, model, self.tb)
        return out_p[:B, :model.gene_dim]

    def __call__(self, t, x):
        assert x.shape[0] == self.B
        return self._fwd(t, x)

    # faithful port of torch_wrapper.forward, pure JAX (for validation)
    def ref(self, t, x):
        B = x.shape[0]
        t_b = jnp.broadcast_to(
            jnp.reshape(t, (-1,))[:1].astype(jnp.float32), (B,))[:, None]
        m = None
        m_uncond = None
        if self.unconditional or self.guided_conditioning:
            m_uncond = self.model.ref_model(x, t_b, self.l, self.y,
                                            unconditional=True, covariate=None)
            m = m_uncond
        if not self.unconditional:
            if self.guided_conditioning:
                for cov in self.conditioning_covariates:
                    mc = self.model.ref_model(x, t_b, self.l, self.y,
                                              unconditional=False, covariate=cov)
                    m = m + self.guidance_weights[cov] * (mc - m_uncond)
            else:
                m = self.model.ref_model(x, t_b, self.l, self.y,
                                         unconditional=False, covariate=None)
        return m


# ----------------------------------------------------------------------------
if __name__ == "__main__":
    key = jax.random.PRNGKey(0)
    k_model, k_x, k_l, k_y1, k_y2 = jax.random.split(key, 5)

    B = 4          # batch of cells
    GENES = 32     # gene-expression dimension
    HIDDEN = 64
    EMB = 8
    cov_num_classes = {"cell_type": 5, "batch": 3}
    conditioning_covariates = ["cell_type", "batch"]
    guidance_weights = {"cell_type": 0.7, "batch": 0.3}

    model = VelocityModel(k_model, GENES, HIDDEN, EMB, cov_num_classes,
                          guided_conditioning=True)

    x = jax.random.normal(k_x, (B, GENES), jnp.float32)
    l = jax.random.normal(k_l, (B, 1), jnp.float32) + 8.0   # log library size
    y = {
        "cell_type": jax.random.randint(k_y1, (B,), 0, cov_num_classes["cell_type"]),
        "batch": jax.random.randint(k_y2, (B,), 0, cov_num_classes["batch"]),
    }
    t = jnp.float32(0.37)  # scalar ODE time

    # guided classifier-free-guidance path
    wrapper = PallasODEWrapper(model, l, y, guidance_weights,
                               conditioning_covariates, unconditional=False)
    out = jax.block_until_ready(wrapper(t, x))
    out_ref = jax.block_until_ready(wrapper.ref(t, x))
    np.testing.assert_allclose(np.asarray(out), np.asarray(out_ref),
                               rtol=1e-2, atol=1e-2)
    assert out.shape == (B, GENES) and out.dtype == jnp.float32

    # unconditional path
    wrapper_u = PallasODEWrapper(model, l, y, guidance_weights,
                                 conditioning_covariates, unconditional=True)
    out_u = jax.block_until_ready(wrapper_u(t, x))
    out_u_ref = jax.block_until_ready(wrapper_u.ref(t, x))
    np.testing.assert_allclose(np.asarray(out_u), np.asarray(out_u_ref),
                               rtol=1e-2, atol=1e-2)

    print("KERNEL_OK")
</pallas_src>

<mosaic_0001>
module attributes {stable_mosaic.version = 11 : i64} {
  func.func @_fused_cfg_mlp_kernel(%arg0: i32, %arg1: i32, %arg2: memref<2xf32, #tpu.memory_space<smem>>, %arg3: memref<8x128xbf16, #tpu.memory_space<vmem>>, %arg4: memref<2x8x128xbf16, #tpu.memory_space<vmem>>, %arg5: memref<128x128xbf16, #tpu.memory_space<vmem>>, %arg6: memref<128x128xbf16, #tpu.memory_space<vmem>>, %arg7: memref<1x128xf32, #tpu.memory_space<vmem>>, %arg8: memref<128x128xbf16, #tpu.memory_space<vmem>>, %arg9: memref<1x128xf32, #tpu.memory_space<vmem>>, %arg10: memref<8x128xf32, #tpu.memory_space<vmem>>, %arg11: memref<8x128xbf16, #tpu.memory_space<vmem>>) attributes {dimension_semantics = [#tpu.dimension_semantics<parallel>, #tpu.dimension_semantics<arbitrary>], iteration_bounds = array<i64: 1, 1>, scalar_prefetch = 1 : i64, scratch_operands = 1 : i64, tpu.core_type = #tpu.core_type<tc>, window_params = [{transform_indices = @transform_0, window_bounds = array<i64: 8, 128>}, {transform_indices = @transform_1, window_bounds = array<i64: 2, 8, 128>}, {pipeline_mode = #tpu.pipeline_mode<synchronous>, transform_indices = @transform_2, window_bounds = array<i64: 128, 128>}, {pipeline_mode = #tpu.pipeline_mode<synchronous>, transform_indices = @transform_3, window_bounds = array<i64: 128, 128>}, {pipeline_mode = #tpu.pipeline_mode<synchronous>, transform_indices = @transform_4, window_bounds = array<i64: 1, 128>}, {pipeline_mode = #tpu.pipeline_mode<synchronous>, transform_indices = @transform_5, window_bounds = array<i64: 128, 128>}, {pipeline_mode = #tpu.pipeline_mode<synchronous>, transform_indices = @transform_6, window_bounds = array<i64: 1, 128>}, {transform_indices = @transform_7, window_bounds = array<i64: 8, 128>}]} {
    %c0_i32 = arith.constant 0 : i32
    %0 = arith.cmpi eq, %arg1, %c0_i32 : i32
    %1 = arith.extui %0 : i1 to i32
    %c0_i32_0 = arith.constant 0 : i32
    %2 = arith.cmpi ne, %1, %c0_i32_0 : i32
    scf.if %2 {
      %c0_8 = arith.constant 0 : index
      %c0_9 = arith.constant 0 : index
      %10 = vector.load %arg3[%c0_8, %c0_9] : memref<8x128xbf16, #tpu.memory_space<vmem>>, vector<8x128xbf16>
      %c0_10 = arith.constant 0 : index
      %c0_11 = arith.constant 0 : index
      %11 = vector.load %arg5[%c0_10, %c0_11] : memref<128x128xbf16, #tpu.memory_space<vmem>>, vector<128x128xbf16>
      %cst_12 = arith.constant dense<0.000000e+00> : vector<8x128xf32>
      %12 = tpu.matmul %10, %11, %cst_12 {dimension_numbers = #tpu.dot_dimension_numbers<[1], [0], [0], [1], [0, 0, 1, 1], [], []>} : vector<8x128xbf16>, vector<128x128xbf16>, vector<8x128xf32> -> vector<8x128xf32>
      %c0_13 = arith.constant 0 : index
      %c0_14 = arith.constant 0 : index
      %13 = vector.load %arg7[%c0_13, %c0_14] : memref<1x128xf32, #tpu.memory_space<vmem>>, vector<1x128xf32>
      %14 = vector.broadcast %13 : vector<1x128xf32> to vector<8x128xf32>
      %15 = arith.addf %12, %14 : vector<8x128xf32>
      %c0_15 = arith.constant 0 : index
      %c0_16 = arith.constant 0 : index
      %16 = vector.load %arg6[%c0_15, %c0_16] : memref<128x128xbf16, #tpu.memory_space<vmem>>, vector<128x128xbf16>
      %cst_17 = arith.constant 0.000000e+00 : f32
      %17 = vector.broadcast %cst_17 : f32 to vector<8x128xf32>
      %c0_18 = arith.constant 0 : index
      %c0_19 = arith.constant 0 : index
      %c0_20 = arith.constant 0 : index
      %18 = vector.load %arg4[%c0_18, %c0_19, %c0_20] : memref<2x8x128xbf16, #tpu.memory_space<vmem>>, vector<1x8x128xbf16>
      %19 = vector.shape_cast %18 : vector<1x8x128xbf16> to vector<8x128xbf16>
      %cst_21 = arith.constant dense<0.000000e+00> : vector<8x128xf32>
      %20 = tpu.matmul %19, %16, %cst_21 {dimension_numbers = #tpu.dot_dimension_numbers<[1], [0], [0], [1], [0, 0, 1, 1], [], []>} : vector<8x128xbf16>, vector<128x128xbf16>, vector<8x128xf32> -> vector<8x128xf32>
      %21 = arith.addf %15, %20 : vector<8x128xf32>
      %c0_22 = arith.constant 0 : index
      %22 = memref.load %arg2[%c0_22] : memref<2xf32, #tpu.memory_space<smem>>
      %cst_23 = arith.constant 0.000000e+00 : f32
      %23 = vector.broadcast %cst_23 : f32 to vector<8x128xf32>
      %24 = arith.maximumf %21, %23 : vector<8x128xf32>
      %25 = vector.broadcast %22 : f32 to vector<8x128xf32>
      %26 = arith.mulf %25, %24 : vector<8x128xf32>
      %27 = arith.addf %17, %26 : vector<8x128xf32>
      %c1 = arith.constant 1 : index
      %c0_24 = arith.constant 0 : index
      %c0_25 = arith.constant 0 : index
      %28 = vector.load %arg4[%c1, %c0_24, %c0_25] : memref<2x8x128xbf16, #tpu.memory_space<vmem>>, vector<1x8x128xbf16>
      %29 = vector.shape_cast %28 : vector<1x8x128xbf16> to vector<8x128xbf16>
      %cst_26 = arith.constant dense<0.000000e+00> : vector<8x128xf32>
      %30 = tpu.matmul %29, %16, %cst_26 {dimension_numbers = #tpu.dot_dimension_numbers<[1], [0], [0], [1], [0, 0, 1, 1], [], []>} : vector<8x128xbf16>, vector<128x128xbf16>, vector<8x128xf32> -> vector<8x128xf32>
      %31 = arith.addf %15, %30 : vector<8x128xf32>
      %c1_27 = arith.constant 1 : index
      %32 = memref.load %arg2[%c1_27] : memref<2xf32, #tpu.memory_space<smem>>
      %cst_28 = arith.constant 0.000000e+00 : f32
      %33 = vector.broadcast %cst_28 : f32 to vector<8x128xf32>
      %34 = arith.maximumf %31, %33 : vector<8x128xf32>
      %35 = vector.broadcast %32 : f32 to vector<8x128xf32>
      %36 = arith.mulf %35, %34 : vector<8x128xf32>
      %37 = arith.addf %27, %36 : vector<8x128xf32>
      %38 = arith.truncf %37 : vector<8x128xf32> to vector<8x128xbf16>
      %c0_29 = arith.constant 0 : index
      %c0_30 = arith.constant 0 : index
      %39 = vector.load %arg11[%c0_29, %c0_30] : memref<8x128xbf16, #tpu.memory_space<vmem>>, vector<8x128xbf16>
      tpu.vector_store %arg11[%c0_29, %c0_30], %38 {strides = array<i32>} : memref<8x128xbf16, #tpu.memory_space<vmem>>, vector<8x128xbf16>,
    } else {
    }
    %c0 = arith.constant 0 : index
    %c0_1 = arith.constant 0 : index
    %3 = vector.load %arg11[%c0, %c0_1] : memref<8x128xbf16, #tpu.memory_space<vmem>>, vector<8x128xbf16>
    %c0_2 = arith.constant 0 : index
    %c0_3 = arith.constant 0 : index
    %4 = vector.load %arg8[%c0_2, %c0_3] : memref<128x128xbf16, #tpu.memory_space<vmem>>, vector<128x128xbf16>
    %cst = arith.constant dense<0.000000e+00> : vector<8x128xf32>
    %5 = tpu.matmul %3, %4, %cst {dimension_numbers = #tpu.dot_dimension_numbers<[1], [0], [0], [1], [0, 0, 1, 1], [], []>} : vector<8x128xbf16>, vector<128x128xbf16>, vector<8x128xf32> -> vector<8x128xf32>
    %c0_4 = arith.constant 0 : index
    %c0_5 = arith.constant 0 : index
    %6 = vector.load %arg9[%c0_4, %c0_5] : memref<1x128xf32, #tpu.memory_space<vmem>>, vector<1x128xf32>
    %7 = vector.broadcast %6 : vector<1x128xf32> to vector<8x128xf32>
    %8 = arith.addf %5, %7 : vector<8x128xf32>
    %c0_6 = arith.constant 0 : index
    %c0_7 = arith.constant 0 : index
    %9 = vector.load %arg10[%c0_6, %c0_7] : memref<8x128xf32, #tpu.memory_space<vmem>>, vector<8x128xf32>
    tpu.vector_store %arg10[%c0_6, %c0_7], %8 {strides = array<i32>} : memref<8x128xf32, #tpu.memory_space<vmem>>, vector<8x128xf32>,
    return
  }
  func.func @transform_0(%arg0: i32, %arg1: i32, %arg2: memref<2xf32, #tpu.memory_space<smem>>) -> (i32, i32) {
    %c0_i32 = arith.constant 0 : i32
    %c0_i32_0 = arith.constant 0 : i32
    return %arg0, %c0_i32 : i32, i32
  }
  func.func @transform_1(%arg0: i32, %arg1: i32, %arg2: memref<2xf32, #tpu.memory_space<smem>>) -> (i32, i32, i32) {
    %c0_i32 = arith.constant 0 : i32
    %c0_i32_0 = arith.constant 0 : i32
    %c0_i32_1 = arith.constant 0 : i32
    return %c0_i32, %arg0, %c0_i32_0 : i32, i32, i32
  }
  func.func @transform_2(%arg0: i32, %arg1: i32, %arg2: memref<2xf32, #tpu.memory_space<smem>>) -> (i32, i32) {
    %c0_i32 = arith.constant 0 : i32
    %c0_i32_0 = arith.constant 0 : i32
    %c0_i32_1 = arith.constant 0 : i32
    return %c0_i32, %c0_i32_0 : i32, i32
  }
  func.func @transform_3(%arg0: i32, %arg1: i32, %arg2: memref<2xf32, #tpu.memory_space<smem>>) -> (i32, i32) {
    %c0_i32 = arith.constant 0 : i32
    %c0_i32_0 = arith.constant 0 : i32
    %c0_i32_1 = arith.constant 0 : i32
    return %c0_i32, %c0_i32_0 : i32, i32
  }
  func.func @transform_4(%arg0: i32, %arg1: i32, %arg2: memref<2xf32, #tpu.memory_space<smem>>) -> (i32, i32) {
    %c0_i32 = arith.constant 0 : i32
    %c0_i32_0 = arith.constant 0 : i32
    %c0_i32_1 = arith.constant 0 : i32
    return %c0_i32, %c0_i32_0 : i32, i32
  }
  func.func @transform_5(%arg0: i32, %arg1: i32, %arg2: memref<2xf32, #tpu.memory_space<smem>>) -> (i32, i32) {
    %c0_i32 = arith.constant 0 : i32
    %c0_i32_0 = arith.constant 0 : i32
    return %c0_i32, %arg1 : i32, i32
  }
  func.func @transform_6(%arg0: i32, %arg1: i32, %arg2: memref<2xf32, #tpu.memory_space<smem>>) -> (i32, i32) {
    %c0_i32 = arith.constant 0 : i32
    %c0_i32_0 = arith.constant 0 : i32
    return %c0_i32, %arg1 : i32, i32
  }
  func.func @transform_7(%arg0: i32, %arg1: i32, %arg2: memref<2xf32, #tpu.memory_space<smem>>) -> (i32, i32) {
    %c0_i32 = arith.constant 0 : i32
    return %arg0, %arg1 : i32, i32
  }
}

</mosaic_0001>

<llo_original>
// kernel: _forward.1
$region0: #{_forward.1}
  #allocation0 [shape = 'u32[]', space=smem, size = 0x4, offset = 0x4, fixed_abs, tag = 'smem constant byte address 0x4 - core index']
  #allocation1 [shape = 'u32[144,128]{1,0:T(1,128)}', space=vmem, size = 0x12000, scoped, tag = 'internal scratch']
  #allocation2 [shape = 'bf16[8,128]{1,0:T(8,128)(2,1)}', space=vmem, size = 0x800, scoped, tag = 'scratch operand']
  #allocation3 [shape = 's32[1]{0}', space=sflag, size = 0x4, scoped, tag = 'scoped memory for _forward.1']
  #allocation4 [shape = 'u8[512]{0}', space=smem, size = 0x200, scoped, tag = 'prefetched SMEM operand 0']
  %s0 = inlined_call_operand.vmem [shape: f32[2], index: 0, kind: input, shape index: {}]
  %s1 = inlined_call_operand.vmem [shape: bf16[8,128], index: 1, kind: input, shape index: {}]
  %s2 = inlined_call_operand.vmem [shape: bf16[2,8,128], index: 2, kind: input, shape index: {}]
  %s3 = inlined_call_operand.hbm [shape: bf16[128,128], index: 3, kind: input, shape index: {}]
  %s4 = inlined_call_operand.hbm [shape: bf16[128,128], index: 4, kind: input, shape index: {}]
  %s5 = inlined_call_operand.vmem [shape: f32[1,128], index: 5, kind: input, shape index: {}, may-alias: {5,7}]
  %s6 = inlined_call_operand.hbm [shape: bf16[128,128], index: 6, kind: input, shape index: {}]
  %s7 = inlined_call_operand.vmem [shape: f32[1,128], index: 7, kind: input, shape index: {}, may-alias: {5,7}]
  %s8 = inlined_call_operand.vmem [shape: f32[8,128], index: 8, kind: output, shape index: {}]
  %s9 = sld [smem:[#allocation0]]
  $region54: #{_forward.1} parent=0
    _
  %s11 = ssub.s32 1, %s9
  %s12 = scalar_select 0, %s11, %s9
  %s13 = sshll.u32 %s0, 4
  %s14 = int_to_ptr.vmem [resolvable:$true] %s13
  %16 = dma.vmem_to_smem %s14, 16, [#allocation4], [#allocation3]
  %17 = dma.done [#allocation3], 16
  %18 = sfence
  $region1: #{_forward.1} parent=0
    #allocation5 [shape = 'u8[32768]{0}', space=vmem, size = 0x8000, scoped, tag = 'input window, operand 3, single buffered']
    #allocation6 [shape = 's32[1]{0}', space=sflag, size = 0x4, scoped, tag = 'scoped memory for _forward.1']
    #allocation7 [shape = 'u8[32768]{0}', space=vmem, size = 0x8000, scoped, tag = 'input window, operand 4, single buffered']
    #allocation8 [shape = 's32[1]{0}', space=sflag, size = 0x4, scoped, tag = 'scoped memory for _forward.1']
    #allocation9 [shape = 'u8[32768]{0}', space=vmem, size = 0x8000, scoped, tag = 'input window, operand 6, single buffered']
    %19 = vsyncpa [#allocation6], 0
    %20 = vsyncpa [#allocation8], 0
    // Predicated region
    $region2: #{_forward.1} parent=1 // pred_check
      _
    $region3: #{_forward.1} parent=1 // pred_check_branch
      %22 = sbr.rel (0) target = $region5
    $region4: #{_forward.1} parent=1 // pred_region
      _
    $region5: #{_forward.1} parent=1 // pred_fallthru
      _
    // Predicated region
    $region6: #{_forward.1} parent=1 // pred_check
      _
    $region7: #{_forward.1} parent=1 // pred_check_branch
      %24 = sbr.rel (0) target = $region9
    $region8: #{_forward.1} parent=1 // pred_region
      _
    $region9: #{_forward.1} parent=1 // pred_fallthru
      _
    // Predicated region
    $region10: #{_forward.1} parent=1 // pred_check
      _
    $region11: #{_forward.1} parent=1 // pred_check_branch
      %26 = sbr.rel (0) target = $region13
    $region12: #{_forward.1} parent=1 // pred_region
      %s28 = ssub.s32 1024, 1024
      %29 = vsyncadd [#allocation6], %s28
      %s30 = sshll.u32 [#allocation5], 4
      %s31 = int_to_ptr.vmem [resolvable:$true] %s30
      %36 = dma.hbm_to_vmem [thread:$0]  %s3, 1024, %s31, [#allocation6], 64, 64, 4
    $region13: #{_forward.1} parent=1 // pred_fallthru
      _
    // Predicated region
    $region14: #{_forward.1} parent=1 // pred_check
      _
    $region15: #{_forward.1} parent=1 // pred_check_branch
      %38 = sbr.rel (0) target = $region17
    $region16: #{_forward.1} parent=1 // pred_region
      %s40 = ssub.s32 1024, 1024
      %41 = vsyncadd [#allocation8], %s40
      %s42 = sshll.u32 [#allocation7], 4
      %s43 = int_to_ptr.vmem [resolvable:$true] %s42
      %48 = dma.hbm_to_vmem [thread:$0]  %s4, 1024, %s43, [#allocation8], 64, 64, 4
    $region17: #{_forward.1} parent=1 // pred_fallthru
      _
    // Predicated region
    $region18: #{_forward.1} parent=1 // pred_check
      _
    $region19: #{_forward.1} parent=1 // pred_check_branch
      %50 = sbr.rel (0) target = $region21
    $region20: #{_forward.1} parent=1 // pred_region
      _
    $region21: #{_forward.1} parent=1 // pred_fallthru
      _
    // Predicated region
    $region22: #{_forward.1} parent=1 // pred_check
      _
    $region23: #{_forward.1} parent=1 // pred_check_branch
      %52 = sbr.rel (0) target = $region25
    $region24: #{_forward.1} parent=1 // pred_region
      %s54 = ssub.s32 1024, 1024
      %55 = vsyncadd [#allocation8], %s54
      %s56 = sshll.u32 [#allocation9], 4
      %s57 = int_to_ptr.vmem [resolvable:$true] %s56
      %62 = dma.hbm_to_vmem [thread:$0]  %s6, 1024, %s57, [#allocation8], 64, 64, 4
    $region25: #{_forward.1} parent=1 // pred_fallthru
      _
    // Predicated region
    $region26: #{_forward.1} parent=1 // pred_check
      _
    $region27: #{_forward.1} parent=1 // pred_check_branch
      %64 = sbr.rel (0) target = $region29
    $region28: #{_forward.1} parent=1 // pred_region
      _
    $region29: #{_forward.1} parent=1 // pred_fallthru
      _
    // Predicated region
    $region30: #{_forward.1} parent=1 // pred_check
      _
    $region31: #{_forward.1} parent=1 // pred_check_branch
      %66 = sbr.rel (0) target = $region33
    $region32: #{_forward.1} parent=1 // pred_region
      %67 = dma.done [#allocation6], 1024
    $region33: #{_forward.1} parent=1 // pred_fallthru
      _
    // Predicated region
    $region34: #{_forward.1} parent=1 // pred_check
      _
    $region35: #{_forward.1} parent=1 // pred_check_branch
      %69 = sbr.rel (0) target = $region37
    $region36: #{_forward.1} parent=1 // pred_region
      %70 = dma.done [#allocation8], 1024
    $region37: #{_forward.1} parent=1 // pred_fallthru
      _
    // Predicated region
    $region38: #{_forward.1} parent=1 // pred_check
      _
    $region39: #{_forward.1} parent=1 // pred_check_branch
      %72 = sbr.rel (0) target = $region41
    $region40: #{_forward.1} parent=1 // pred_region
      %73 = dma.done [#allocation8], 1024
    $region41: #{_forward.1} parent=1 // pred_fallthru
      _
    %p75 = scmp.eq.s32.totalorder 0, 0
    // Predicated region
    $region42: #{_forward.1} parent=1 // pred_check
      %p76 = pneg %p75
    $region43: #{_forward.1} parent=1 // pred_check_branch
      %78 = sbr.rel (%p76) target = $region45
    $region44: #{_forward.1} parent=1 // pred_region
      %v79 = vld [vmem:[%s1] sm:$0xf]
      %v80 = vld [vmem:[#allocation5] sm:$0xf]
      %v81 = vld [vmem:[#allocation5 + $0x4] sm:$0xf]
      %v82 = vld [vmem:[#allocation5 + $0x8] sm:$0xf]
      %v83 = vld [vmem:[#allocation5 + $0xc] sm:$0xf]
      %v84 = vld [vmem:[#allocation5 + $0x10] sm:$0xf]
      %v85 = vld [vmem:[#allocation5 + $0x14] sm:$0xf]
      %v86 = vld [vmem:[#allocation5 + $0x18] sm:$0xf]
      %v87 = vld [vmem:[#allocation5 + $0x1c] sm:$0xf]
      %v88 = vld [vmem:[#allocation5 + $0x20] sm:$0xf]
      %v89 = vld [vmem:[#allocation5 + $0x24] sm:$0xf]
      %v90 = vld [vmem:[#allocation5 + $0x28] sm:$0xf]
      %v91 = vld [vmem:[#allocation5 + $0x2c] sm:$0xf]
      %v92 = vld [vmem:[#allocation5 + $0x30] sm:$0xf]
      %v93 = vld [vmem:[#allocation5 + $0x34] sm:$0xf]
      %v94 = vld [vmem:[#allocation5 + $0x38] sm:$0xf]
      %v95 = vld [vmem:[#allocation5 + $0x3c] sm:$0xf]
      %v96 = vld [vmem:[%s5] sm:$0x1]
      %v98 = vlaneseq
      %v99 = vshrl.u32 %v98, 7
      %v100 = vsub.s32 0, %v99
      %v101 = vrot.slane %v96, %v100
      %v119 = vunpack.c.l.b16 %v80
      %v120 = vunpack.c.l.b16 %v81
      %v121 = vunpack.c.l.b16 %v82
      %v122 = vunpack.c.l.b16 %v83
      %v123 = vunpack.c.l.b16 %v84
      %v124 = vunpack.c.l.b16 %v85
      %v125 = vunpack.c.l.b16 %v86
      %v126 = vunpack.c.l.b16 %v87
      %v127 = vunpack.c.l.b16 %v88
      %v128 = vunpack.c.l.b16 %v89
      %v129 = vunpack.c.l.b16 %v90
      %v130 = vunpack.c.l.b16 %v91
      %v131 = vunpack.c.l.b16 %v92
      %v132 = vunpack.c.l.b16 %v93
      %v133 = vunpack.c.l.b16 %v94
      %v134 = vunpack.c.l.b16 %v95
      %v135 = vpack.c.b16 %v120, %v119
      %v136 = vpack.c.b16 %v122, %v121
      %v137 = vpack.c.b16 %v124, %v123
      %v138 = vpack.c.b16 %v126, %v125
      %v139 = vpack.c.b16 %v128, %v127
      %v140 = vpack.c.b16 %v130, %v129
      %v141 = vpack.c.b16 %v132, %v131
      %v142 = vpack.c.b16 %v134, %v133
      %151 = vmatprep.subr.bf16.mxu0 0
      %152 = vmatpush1.bf16.msra.mxu0 %v142
      %153 = vmatprep.subr.bf16.mxu0 0
      %154 = vmatpush1.bf16.msra.mxu0 %v141
      %155 = vmatprep.subr.bf16.mxu0 0
      %156 = vmatpush1.bf16.msra.mxu0 %v140
      %157 = vmatprep.subr.bf16.mxu0 0
      %158 = vmatpush1.bf16.msra.mxu0 %v139
      %159 = vmatprep.subr.bf16.mxu0 0
      %160 = vmatpush1.bf16.msra.mxu0 %v138
      %161 = vmatprep.subr.bf16.mxu0 0
      %162 = vmatpush1.bf16.msra.mxu0 %v137
      %163 = vmatprep.subr.bf16.mxu0 0
      %164 = vmatpush1.bf16.msra.mxu0 %v136
      %165 = vmatprep.subr.bf16.mxu0 0
      %166 = vmatpush1.bf16.msra.mxu0 %v135
      %167 = vmatprep.subr.bf16.mxu0 0
      %168 = vmatpush2.bf16.msra.mxu0 0
      %169 = vmatprep.subr.bf16.mxu0 0
      %170 = vmatpush2.bf16.msra.mxu0 0
      %171 = vmatprep.subr.bf16.mxu0 0
      %172 = vmatpush2.bf16.msra.mxu0 0
      %173 = vmatprep.subr.bf16.mxu0 0
      %174 = vmatpush2.bf16.msra.mxu0 0
      %175 = vmatprep.subr.bf16.mxu0 0
      %176 = vmatpush2.bf16.msra.mxu0 0
      %177 = vmatprep.subr.bf16.mxu0 0
      %178 = vmatpush2.bf16.msra.mxu0 0
      %179 = vmatprep.subr.bf16.mxu0 0
      %180 = vmatpush2.bf16.msra.mxu0 0
      %181 = vmatprep.subr.bf16.mxu0 0
      %182 = vmatpush2.bf16.msra.mxu0 0
      %183 = vmatprep.mubr.bf16.mxu0 0
      %184 = vmatmul.mubr.bf16.gmra.mxu0 %v79
      %v185 = vpop.f32.mrf.mxu0
      %v186 = vadd.f32 %v101, %v185
      %v187 = vpop.f32.mrf.mxu0
      %v188 = vpop.f32.mrf.mxu0
      %v189 = vpop.f32.mrf.mxu0
      %190 = vdwg.mxu0
      %v191 = vld [vmem:[#allocation7] sm:$0xf]
      %v192 = vld [vmem:[#allocation7 + $0x4] sm:$0xf]
      %v193 = vld [vmem:[#allocation7 + $0x8] sm:$0xf]
      %v194 = vld [vmem:[#allocation7 + $0xc] sm:$0xf]
      %v195 = vld [vmem:[#allocation7 + $0x10] sm:$0xf]
      %v196 = vld [vmem:[#allocation7 + $0x14] sm:$0xf]
      %v197 = vld [vmem:[#allocation7 + $0x18] sm:$0xf]
      %v198 = vld [vmem:[#allocation7 + $0x1c] sm:$0xf]
      %v199 = vld [vmem:[#allocation7 + $0x20] sm:$0xf]
      %v200 = vld [vmem:[#allocation7 + $0x24] sm:$0xf]
      %v201 = vld [vmem:[#allocation7 + $0x28] sm:$0xf]
      %v202 = vld [vmem:[#allocation7 + $0x2c] sm:$0xf]
      %v203 = vld [vmem:[#allocation7 + $0x30] sm:$0xf]
      %v204 = vld [vmem:[#allocation7 + $0x34] sm:$0xf]
      %v205 = vld [vmem:[#allocation7 + $0x38] sm:$0xf]
      %v206 = vld [vmem:[#allocation7 + $0x3c] sm:$0xf]
      %v207 = vld [vmem:[%s2] sm:$0xf]
      %v224 = vunpack.c.l.b16 %v191
      %v225 = vunpack.c.l.b16 %v192
      %v226 = vunpack.c.l.b16 %v193
      %v227 = vunpack.c.l.b16 %v194
      %v228 = vunpack.c.l.b16 %v195
      %v229 = vunpack.c.l.b16 %v196
      %v230 = vunpack.c.l.b16 %v197
      %v231 = vunpack.c.l.b16 %v198
      %v232 = vunpack.c.l.b16 %v199
      %v233 = vunpack.c.l.b16 %v200
      %v234 = vunpack.c.l.b16 %v201
      %v235 = vunpack.c.l.b16 %v202
      %v236 = vunpack.c.l.b16 %v203
      %v237 = vunpack.c.l.b16 %v204
      %v238 = vunpack.c.l.b16 %v205
      %v239 = vunpack.c.l.b16 %v206
      %v240 = vpack.c.b16 %v225, %v224
      %v241 = vpack.c.b16 %v227, %v226
      %v242 = vpack.c.b16 %v229, %v228
      %v243 = vpack.c.b16 %v231, %v230
      %v244 = vpack.c.b16 %v233, %v232
      %v245 = vpack.c.b16 %v235, %v234
      %v246 = vpack.c.b16 %v237, %v236
      %v247 = vpack.c.b16 %v239, %v238
      %256 = vmatprep.subr.bf16.mxu0 0
      %257 = vmatpush1.bf16.msra.mxu0 %v247
      %258 = vmatprep.subr.bf16.mxu0 0
      %259 = vmatpush1.bf16.msra.mxu0 %v246
      %260 = vmatprep.subr.bf16.mxu0 0
      %261 = vmatpush1.bf16.msra.mxu0 %v245
      %262 = vmatprep.subr.bf16.mxu0 0
      %263 = vmatpush1.bf16.msra.mxu0 %v244
      %264 = vmatprep.subr.bf16.mxu0 0
      %265 = vmatpush1.bf16.msra.mxu0 %v243
      %266 = vmatprep.subr.bf16.mxu0 0
      %267 = vmatpush1.bf16.msra.mxu0 %v242
      %268 = vmatprep.subr.bf16.mxu0 0
      %269 = vmatpush1.bf16.msra.mxu0 %v241
      %270 = vmatprep.subr.bf16.mxu0 0
      %271 = vmatpush1.bf16.msra.mxu0 %v240
      %272 = vmatprep.subr.bf16.mxu0 0
      %273 = vmatpush2.bf16.msra.mxu0 0
      %274 = vmatprep.subr.bf16.mxu0 0
      %275 = vmatpush2.bf16.msra.mxu0 0
      %276 = vmatprep.subr.bf16.mxu0 0
      %277 = vmatpush2.bf16.msra.mxu0 0
      %278 = vmatprep.subr.bf16.mxu0 0
      %279 = vmatpush2.bf16.msra.mxu0 0
      %280 = vmatprep.subr.bf16.mxu0 0
      %281 = vmatpush2.bf16.msra.mxu0 0
      %282 = vmatprep.subr.bf16.mxu0 0
      %283 = vmatpush2.bf16.msra.mxu0 0
      %284 = vmatprep.subr.bf16.mxu0 0
      %285 = vmatpush2.bf16.msra.mxu0 0
      %286 = vmatprep.subr.bf16.mxu0 0
      %287 = vmatpush2.bf16.msra.mxu0 0
      %288 = vmatprep.mubr.bf16.mxu0 0
      %289 = vmatmul.mubr.bf16.gmra.mxu0 %v207
      %v290 = vpop.f32.mrf.mxu0
      %v291 = vadd.f32 0.0, %v290
      %v292 = vpop.f32.mrf.mxu0
      %v293 = vpop.f32.mrf.mxu0
      %v294 = vpop.f32.mrf.mxu0
      %295 = vdwg.mxu0
      %v296 = vadd.f32 %v186, %v291
      %s297 = sld [smem:[#allocation4]]
      %v298 = vmax.f32 %v296, 0.0
      %v299 = vstv %s297
      %v300 = vmul.f32 %v299, %v298
      %v301 = vadd.f32 %v300, 0.0
      %s302 = scalar_lea.vmem %s2, 4
      %v303 = vld [vmem:[%s302] sm:$0xf]
      %304 = vmatprep.subr.bf16.mxu0 0
      %305 = vmatpush1.bf16.msra.mxu0 %v247
      %306 = vmatprep.subr.bf16.mxu0 0
      %307 = vmatpush1.bf16.msra.mxu0 %v246
      %308 = vmatprep.subr.bf16.mxu0 0
      %309 = vmatpush1.bf16.msra.mxu0 %v245
      %310 = vmatprep.subr.bf16.mxu0 0
      %311 = vmatpush1.bf16.msra.mxu0 %v244
      %312 = vmatprep.subr.bf16.mxu0 0
      %313 = vmatpush1.bf16.msra.mxu0 %v243
      %314 = vmatprep.subr.bf16.mxu0 0
      %315 = vmatpush1.bf16.msra.mxu0 %v242
      %316 = vmatprep.subr.bf16.mxu0 0
      %317 = vmatpush1.bf16.msra.mxu0 %v241
      %318 = vmatprep.subr.bf16.mxu0 0
      %319 = vmatpush1.bf16.msra.mxu0 %v240
      %320 = vmatprep.subr.bf16.mxu0 0
      %321 = vmatpush2.bf16.msra.mxu0 0
      %322 = vmatprep.subr.bf16.mxu0 0
      %323 = vmatpush2.bf16.msra.mxu0 0
      %324 = vmatprep.subr.bf16.mxu0 0
      %325 = vmatpush2.bf16.msra.mxu0 0
      %326 = vmatprep.subr.bf16.mxu0 0
      %327 = vmatpush2.bf16.msra.mxu0 0
      %328 = vmatprep.subr.bf16.mxu0 0
      %329 = vmatpush2.bf16.msra.mxu0 0
      %330 = vmatprep.subr.bf16.mxu0 0
      %331 = vmatpush2.bf16.msra.mxu0 0
      %332 = vmatprep.subr.bf16.mxu0 0
      %333 = vmatpush2.bf16.msra.mxu0 0
      %334 = vmatprep.subr.bf16.mxu0 0
      %335 = vmatpush2.bf16.msra.mxu0 0
      %336 = vmatprep.mubr.bf16.mxu0 0
      %337 = vmatmul.mubr.bf16.gmra.mxu0 %v303
      %v338 = vpop.f32.mrf.mxu0
      %v339 = vadd.f32 0.0, %v338
      %v340 = vpop.f32.mrf.mxu0
      %v341 = vpop.f32.mrf.mxu0
      %v342 = vpop.f32.mrf.mxu0
      %343 = vdwg.mxu0
      %v344 = vadd.f32 %v186, %v339
      %s345 = sld [smem:[#allocation4 + $0x1]]
      %v346 = vmax.f32 %v344, 0.0
      %v347 = vstv %s345
      %v348 = vmul.f32 %v347, %v346
      %v349 = vadd.f32 %v301, %v348
      %v350 = vpack.c.bf16 %v349, %v349
      %351 = vst [vmem:[#allocation2] sm:$0xf] %v350
    $region45: #{_forward.1} parent=1 // pred_fallthru
      _
    %v352 = vld [vmem:[#allocation2] sm:$0xf]
    %v353 = vld [vmem:[#allocation9] sm:$0xf]
    %v354 = vld [vmem:[#allocation9 + $0x4] sm:$0xf]
    %v355 = vld [vmem:[#allocation9 + $0x8] sm:$0xf]
    %v356 = vld [vmem:[#allocation9 + $0xc] sm:$0xf]
    %v357 = vld [vmem:[#allocation9 + $0x10] sm:$0xf]
    %v358 = vld [vmem:[#allocation9 + $0x14] sm:$0xf]
    %v359 = vld [vmem:[#allocation9 + $0x18] sm:$0xf]
    %v360 = vld [vmem:[#allocation9 + $0x1c] sm:$0xf]
    %v361 = vld [vmem:[#allocation9 + $0x20] sm:$0xf]
    %v362 = vld [vmem:[#allocation9 + $0x24] sm:$0xf]
    %v363 = vld [vmem:[#allocation9 + $0x28] sm:$0xf]
    %v364 = vld [vmem:[#allocation9 + $0x2c] sm:$0xf]
    %v365 = vld [vmem:[#allocation9 + $0x30] sm:$0xf]
    %v366 = vld [vmem:[#allocation9 + $0x34] sm:$0xf]
    %v367 = vld [vmem:[#allocation9 + $0x38] sm:$0xf]
    %v368 = vld [vmem:[#allocation9 + $0x3c] sm:$0xf]
    %v369 = vld [vmem:[%s7] sm:$0x1]
    %v371 = vlaneseq
    %v372 = vshrl.u32 %v371, 7
    %v373 = vsub.s32 0, %v372
    %v374 = vrot.slane %v369, %v373
    %v392 = vunpack.c.l.b16 %v353
    %v393 = vunpack.c.l.b16 %v354
    %v394 = vunpack.c.l.b16 %v355
    %v395 = vunpack.c.l.b16 %v356
    %v396 = vunpack.c.l.b16 %v357
    %v397 = vunpack.c.l.b16 %v358
    %v398 = vunpack.c.l.b16 %v359
    %v399 = vunpack.c.l.b16 %v360
    %v400 = vunpack.c.l.b16 %v361
    %v401 = vunpack.c.l.b16 %v362
    %v402 = vunpack.c.l.b16 %v363
    %v403 = vunpack.c.l.b16 %v364
    %v404 = vunpack.c.l.b16 %v365
    %v405 = vunpack.c.l.b16 %v366
    %v406 = vunpack.c.l.b16 %v367
    %v407 = vunpack.c.l.b16 %v368
    %v408 = vpack.c.b16 %v393, %v392
    %v409 = vpack.c.b16 %v395, %v394
    %v410 = vpack.c.b16 %v397, %v396
    %v411 = vpack.c.b16 %v399, %v398
    %v412 = vpack.c.b16 %v401, %v400
    %v413 = vpack.c.b16 %v403, %v402
    %v414 = vpack.c.b16 %v405, %v404
    %v415 = vpack.c.b16 %v407, %v406
    %424 = vmatprep.subr.bf16.mxu0 0
    %425 = vmatpush1.bf16.msra.mxu0 %v415
    %426 = vmatprep.subr.bf16.mxu0 0
    %427 = vmatpush1.bf16.msra.mxu0 %v414
    %428 = vmatprep.subr.bf16.mxu0 0
    %429 = vmatpush1.bf16.msra.mxu0 %v413
    %430 = vmatprep.subr.bf16.mxu0 0
    %431 = vmatpush1.bf16.msra.mxu0 %v412
    %432 = vmatprep.subr.bf16.mxu0 0
    %433 = vmatpush1.bf16.msra.mxu0 %v411
    %434 = vmatprep.subr.bf16.mxu0 0
    %435 = vmatpush1.bf16.msra.mxu0 %v410
    %436 = vmatprep.subr.bf16.mxu0 0
    %437 = vmatpush1.bf16.msra.mxu0 %v409
    %438 = vmatprep.subr.bf16.mxu0 0
    %439 = vmatpush1.bf16.msra.mxu0 %v408
    %440 = vmatprep.subr.bf16.mxu0 0
    %441 = vmatpush2.bf16.msra.mxu0 0
    %442 = vmatprep.subr.bf16.mxu0 0
    %443 = vmatpush2.bf16.msra.mxu0 0
    %444 = vmatprep.subr.bf16.mxu0 0
    %445 = vmatpush2.bf16.msra.mxu0 0
    %446 = vmatprep.subr.bf16.mxu0 0
    %447 = vmatpush2.bf16.msra.mxu0 0
    %448 = vmatprep.subr.bf16.mxu0 0
    %449 = vmatpush2.bf16.msra.mxu0 0
    %450 = vmatprep.subr.bf16.mxu0 0
    %451 = vmatpush2.bf16.msra.mxu0 0
    %452 = vmatprep.subr.bf16.mxu0 0
    %453 = vmatpush2.bf16.msra.mxu0 0
    %454 = vmatprep.subr.bf16.mxu0 0
    %455 = vmatpush2.bf16.msra.mxu0 0
    %456 = vmatprep.mubr.bf16.mxu0 0
    %457 = vmatmul.mubr.bf16.gmra.mxu0 %v352
    %v458 = vpop.f32.mrf.mxu0
    %v459 = vadd.f32 %v374, %v458
    %v460 = vpop.f32.mrf.mxu0
    %v461 = vpop.f32.mrf.mxu0
    %v462 = vpop.f32.mrf.mxu0
    %463 = vdwg.mxu0
    %464 = vst [vmem:[%s8] sm:$0xff] %v459
    // Predicated region
    $region46: #{_forward.1} parent=1 // pred_check
      _
    $region47: #{_forward.1} parent=1 // pred_check_branch
      %466 = sbr.rel (0) target = $region49
    $region48: #{_forward.1} parent=1 // pred_region
      _
    $region49: #{_forward.1} parent=1 // pred_fallthru
      _
    // Predicated region
    $region50: #{_forward.1} parent=1 // pred_check
      _
    $region51: #{_forward.1} parent=1 // pred_check_branch
      %468 = sbr.rel (0) target = $region53
    $region52: #{_forward.1} parent=1 // pred_region
      _
    $region53: #{_forward.1} parent=1 // pred_fallthru
      _
    %469 = vsyncpa [#allocation6], 1
    %470 = vsyncpa [#allocation8], 1

</llo_original>
